<compile_context>
chip_gen: v7x
topology: tpu7x:2x2x1
jax: 0.10.0
libtpu: 0.0.40
codegen_flags: <defaults>
</compile_context>

<pallas_src>
import functools

import numpy as np
import jax
import jax.numpy as jnp
from jax.experimental import pallas as pl
from jax.experimental.pallas import tpu as pltpu

# ---------------- STFT configuration (small, consistent with the module) -----
FILTER_LENGTH = 64          # module default 400; scaled down for a small demo
HOP_LENGTH = 16             # module default 160
WIN_LENGTH = 64
CUTOFF = FILTER_LENGTH // 2 + 1          # 33
SCALE = FILTER_LENGTH / HOP_LENGTH       # 4.0

BATCH = 2
NUM_SAMPLES = 256
N_FRAMES = NUM_SAMPLES // HOP_LENGTH + 1             # 17 frames (after reflect pad)
T_OUT = FILTER_LENGTH + HOP_LENGTH * (N_FRAMES - 1)  # 320 = conv_transpose output len
PAD = FILTER_LENGTH // 2                             # 32

# MXU-friendly padded widths (K/N multiples of 128 on all generations).
SPEC_PAD = 128              # 2*CUTOFF = 66 -> 128 spectrum lanes
CONTRIB_PAD = 128           # FILTER_LENGTH = 64 -> 128 contrib lanes

# Overlap-add decomposition: frame t's 64 samples land at untrimmed-output lanes
# [16t - 32, 16t + 32); frames t and t + GROUPS are exactly 128 lanes apart, so placement
# within a phase group is vreg-aligned concatenation + one static window slice.
GROUPS = 128 // HOP_LENGTH                           # 8 phases (t mod 8)
Q_BLOCKS = -(-N_FRAMES // GROUPS)                    # 3 frame blocks of 128 lanes / phase
CANVAS = CONTRIB_PAD * (Q_BLOCKS + 1)                # 512 (one leading zero block)

assert 128 % HOP_LENGTH == 0 and FILTER_LENGTH % HOP_LENGTH == 0
assert FILTER_LENGTH <= CONTRIB_PAD
assert CONTRIB_PAD + PAD + NUM_SAMPLES <= CANVAS     # every window fits the canvas


# ---------------- deterministic parameter construction (numpy) ---------------
def _build_weights():
    fourier_basis = np.fft.fft(np.eye(FILTER_LENGTH))
    fourier_basis = np.vstack(
        [np.real(fourier_basis[:CUTOFF, :]), np.imag(fourier_basis[:CUTOFF, :])]
    )  # [2*cutoff, L]
    forward_basis = fourier_basis.astype(np.float32)
    inverse_basis = np.linalg.pinv(SCALE * fourier_basis).T.astype(np.float32)  # [2*cutoff, L]

    # periodic ('fftbins=True') hamming window; win_length == filter_length so
    # librosa.util.pad_center is a no-op here.
    n = np.arange(FILTER_LENGTH)
    fft_window = (0.54 - 0.46 * np.cos(2.0 * np.pi * n / FILTER_LENGTH)).astype(np.float32)

    forward_basis = forward_basis * fft_window[None, :]
    inverse_basis = inverse_basis * fft_window[None, :]

    # exact f32 weights (reference) ...
    w_fwd_f32 = np.ascontiguousarray(forward_basis.T)       # [L, 2*cutoff]
    w_inv_f32 = np.ascontiguousarray(inverse_basis)         # [2*cutoff, L]

    # ... and the zero-padded MXU operands: 66 -> 128 spectrum lanes, 64 -> 128 contrib
    # lanes.  Padded columns/rows are exact zeros, so the math is unchanged.
    w_fwd_pad = np.zeros((FILTER_LENGTH, SPEC_PAD), np.float32)
    w_fwd_pad[:, :2 * CUTOFF] = w_fwd_f32
    w_inv_pad = np.zeros((SPEC_PAD, CONTRIB_PAD), np.float32)
    w_inv_pad[:2 * CUTOFF, :FILTER_LENGTH] = w_inv_f32
    return w_fwd_f32, w_inv_f32, w_fwd_pad, w_inv_pad, fft_window


def _build_norm(fft_window):
    # librosa.filters.window_sumsquare (norm=None) compensation + the final
    # filter_length/hop scale, as a per-sample multiplier over the untrimmed output.
    win_sq = fft_window.astype(np.float32) ** 2
    wsum = np.zeros(T_OUT, dtype=np.float32)
    for t in range(N_FRAMES):
        s = t * HOP_LENGTH
        wsum[s:s + FILTER_LENGTH] += win_sq
    tiny = np.finfo(np.float32).tiny
    return np.where(wsum > tiny, SCALE / wsum, SCALE).astype(np.float32)   # [T_OUT]


# ---------------- fused Pallas kernel -----------------------------------------
def stft_fused_kernel(frames_ref, wfwd_ref, winv_ref, norm_ref, out_ref, *, b_tile):
    # frames_ref: [M_TILE, FILTER_LENGTH]   bf16, frame-major rows (row = t*b_tile + b)
    # wfwd_ref:   [FILTER_LENGTH, SPEC_PAD] bf16, windowed analysis basis (real|imag, 0-pad)
    # winv_ref:   [SPEC_PAD, CONTRIB_PAD]   bf16, windowed pinv synthesis basis (0-pad)
    # norm_ref:   [1, NUM_SAMPLES]          f32,  window_sumsquare comp * scale (trimmed)
    # out_ref:    [b_tile, NUM_SAMPLES]     f32,  lane-dense reconstruction rows

    # --- analysis: ONE MXU contraction, batch folded into M --------------------------
    spec = jnp.dot(frames_ref[...], wfwd_ref[...],
                   preferred_element_type=jnp.float32)            # [M_TILE, 128] f32

    # magnitude*cos(phase) == real and magnitude*sin(phase) == imag exactly, so the
    # recombined spectrum is `spec` itself — no sqrt/atan2/cos/sin anywhere.

    # --- synthesis: ONE MXU contraction, K = N = 128 (MXU-native tiles) ---------------
    contrib = jnp.dot(spec.astype(jnp.bfloat16), winv_ref[...],
                      preferred_element_type=jnp.float32)         # [M_TILE, 128] f32

    # --- conv_transpose1d overlap-add + trim, lane-dense, no widen table --------------
    # Frame t contributes to output lanes [16t-32, 16t+32).  For phase p = t mod 8 the
    # frames p, p+8, p+16 sit exactly 128 lanes apart, so we lay them side by side with a
    # vreg-aligned concat (leading 128-lane zero block for the trimmed head) and read one
    # static 256-wide window; the filter_length/2 trim on both ends falls out of the
    # window bounds.  All elementwise work stays f32 (v5e VPU has no bf16).
    zblk = jnp.zeros((b_tile, CONTRIB_PAD), jnp.float32)
    acc = jnp.zeros((b_tile, NUM_SAMPLES), jnp.float32)
    for p in range(GROUPS):                      # static unroll: 8 phases
        blocks = [zblk]
        for q in range(Q_BLOCKS):
            t = GROUPS * q + p
            blocks.append(contrib[t * b_tile:(t + 1) * b_tile, :] if t < N_FRAMES else zblk)
        canvas = jnp.concatenate(blocks, axis=1)                  # [b_tile, 512]
        off = CONTRIB_PAD + PAD - HOP_LENGTH * p                  # static window start
        acc = acc + canvas[:, off:off + NUM_SAMPLES]              # [b_tile, 256]

    # window_sumsquare normalization + filter_length/hop scale, applied once.
    out_ref[...] = acc * norm_ref[...]


# ---------------- host wrapper -------------------------------------------------
def stft_forward(x, w_fwd_bf16, w_inv_bf16, norm_trim, *, b_tile=None):
    B, num_samples = x.shape
    assert num_samples == NUM_SAMPLES
    if b_tile is None:
        # Single grid step (whole batch in one block) — right call on 1-TC v5e/v6e.
        # On v7x with larger B, pass b_tile = B // 2 so the "parallel" grid axis feeds
        # both TensorCores with balanced chunks.
        b_tile = B
    assert B % b_tile == 0
    n_tiles = B // b_tile
    m_real = N_FRAMES * b_tile
    m_tile = ((m_real + 7) // 8) * 8          # sublane-aligned matmul M per grid step

    # transform()'s reflect pad + framing, host-side (tiny; pipelined by BlockSpec DMA;
    # keeps lane-sparse XLU relayout out of the kernel).
    padded = jnp.pad(x, ((0, 0), (PAD, PAD)), mode="reflect")                  # [B, 320]
    idx = (np.arange(N_FRAMES)[:, None] * HOP_LENGTH
           + np.arange(FILTER_LENGTH)[None, :])
    frames = padded[:, idx]                                                    # [B, 17, 64]
    # frame-major rows inside each batch tile: row = t*b_tile + b_local
    frames = frames.reshape(n_tiles, b_tile, N_FRAMES, FILTER_LENGTH)
    frames = jnp.transpose(frames, (0, 2, 1, 3)).reshape(n_tiles, m_real, FILTER_LENGTH)
    if m_tile != m_real:
        frames = jnp.pad(frames, ((0, 0), (0, m_tile - m_real), (0, 0)))
    frames = frames.reshape(n_tiles * m_tile, FILTER_LENGTH).astype(jnp.bfloat16)

    flops = 2 * n_tiles * m_tile * (FILTER_LENGTH * SPEC_PAD + SPEC_PAD * CONTRIB_PAD)
    bytes_accessed = (frames.size * 2
                      + (FILTER_LENGTH * SPEC_PAD + SPEC_PAD * CONTRIB_PAD) * 2
                      + NUM_SAMPLES * 4 + B * NUM_SAMPLES * 4)

    out = pl.pallas_call(
        functools.partial(stft_fused_kernel, b_tile=b_tile),
        grid=(n_tiles,),
        in_specs=[
            pl.BlockSpec((m_tile, FILTER_LENGTH), lambda i: (i, 0)),
            # Grid-invariant weights/norm.  With multi-step grids at production scale,
            # also consider pipeline_mode=pl.Buffered(1) for these constants to drop the
            # second VMEM buffer (matters under v7x's 64 MiB VMEM).
            pl.BlockSpec((FILTER_LENGTH, SPEC_PAD), lambda i: (0, 0)),
            pl.BlockSpec((SPEC_PAD, CONTRIB_PAD), lambda i: (0, 0)),
            pl.BlockSpec((1, NUM_SAMPLES), lambda i: (0, 0)),
        ],
        out_specs=pl.BlockSpec((b_tile, NUM_SAMPLES), lambda i: (i, 0)),
        out_shape=jax.ShapeDtypeStruct((B, NUM_SAMPLES), jnp.float32),
        compiler_params=pltpu.CompilerParams(
            dimension_semantics=("parallel",),
            vmem_limit_bytes=32 * 1024 * 1024),
        cost_estimate=pl.CostEstimate(
            flops=flops, transcendentals=0, bytes_accessed=bytes_accessed),
    )(frames, w_fwd_bf16, w_inv_bf16, norm_trim)

    # torch's conv_transpose1d NCL layout [B, 1, num_samples]; reshape is free metadata.
    return out.reshape(B, 1, NUM_SAMPLES)


# ---------------- pure-JAX f32 reference (module math) for a self-check --------
def stft_reference(x, w_fwd_f32, w_inv_f32, norm_full):
    B = x.shape[0]
    padded = jnp.pad(x, ((0, 0), (PAD, PAD)), mode="reflect")
    idx = (np.arange(N_FRAMES)[:, None] * HOP_LENGTH
           + np.arange(FILTER_LENGTH)[None, :])
    frames = padded[:, idx]                                        # [B, 17, 64]
    spec = jnp.einsum("btj,jc->btc", frames, w_fwd_f32)            # [B, 17, 66]
    contrib = jnp.einsum("btc,cj->btj", spec, w_inv_f32)           # [B, 17, 64]
    y = jnp.zeros((B, T_OUT), jnp.float32)
    for t in range(N_FRAMES):
        y = y.at[:, t * HOP_LENGTH:t * HOP_LENGTH + FILTER_LENGTH].add(contrib[:, t, :])
    y = y * norm_full[None, :]
    return y[:, PAD:T_OUT - PAD].reshape(B, 1, NUM_SAMPLES)


if __name__ == "__main__":
    w_fwd_f32_np, w_inv_f32_np, w_fwd_pad_np, w_inv_pad_np, fft_window = _build_weights()
    norm_full_np = _build_norm(fft_window)

    # bf16 MXU operands (f32 accumulation in-kernel); exact f32 copies for the reference.
    w_fwd_bf16 = jnp.asarray(w_fwd_pad_np, dtype=jnp.bfloat16)     # [64, 128]
    w_inv_bf16 = jnp.asarray(w_inv_pad_np, dtype=jnp.bfloat16)     # [128, 128]
    norm_trim = jnp.asarray(
        norm_full_np[PAD:PAD + NUM_SAMPLES].reshape(1, NUM_SAMPLES))  # [1, 256]

    key = jax.random.PRNGKey(0)
    x = jax.random.normal(key, (BATCH, NUM_SAMPLES), dtype=jnp.float32)

    recon = stft_forward(x, w_fwd_bf16, w_inv_bf16, norm_trim)
    recon = jax.block_until_ready(recon)

    assert recon.shape == (BATCH, 1, NUM_SAMPLES), recon.shape
    assert recon.dtype == jnp.float32
    assert bool(jnp.all(jnp.isfinite(recon)))

    ref = stft_reference(x, jnp.asarray(w_fwd_f32_np), jnp.asarray(w_inv_f32_np),
                         jnp.asarray(norm_full_np))
    err = float(jnp.max(jnp.abs(recon - ref)))
    # Error budget (bf16 MXU operands, f32 accumulation): bf16 products are exact in f32
    # (8-bit mantissas), so the error is operand rounding (~2^-9 rel) propagated through
    # two K<=128 contractions, the 4-frame overlap-add and the ~2.5x norm.  RMS-propagated
    # max-abs error vs the f32 reference is ~1e-2 for N(0,1) inputs; 5e-2 keeps ~5x headroom.
    assert err < 5e-2, f"mismatch vs pure-JAX f32 reference: max abs err {err}"

    print("KERNEL_OK")
</pallas_src>

<mosaic_0001>
module attributes {stable_mosaic.version = 11 : i64} {
  func.func @stft_fused_kernel(%arg0: i32, %arg1: memref<40x64xbf16, #tpu.memory_space<vmem>>, %arg2: memref<64x128xbf16, #tpu.memory_space<vmem>>, %arg3: memref<128x128xbf16, #tpu.memory_space<vmem>>, %arg4: memref<1x256xf32, #tpu.memory_space<vmem>>, %arg5: memref<2x256xf32, #tpu.memory_space<vmem>>) attributes {dimension_semantics = [#tpu.dimension_semantics<parallel>], iteration_bounds = array<i64: 1>, scalar_prefetch = 0 : i64, scratch_operands = 0 : i64, tpu.core_type = #tpu.core_type<tc>, window_params = [{transform_indices = @transform_0, window_bounds = array<i64: 40, 64>}, {pipeline_mode = #tpu.pipeline_mode<synchronous>, transform_indices = @transform_1, window_bounds = array<i64: 64, 128>}, {pipeline_mode = #tpu.pipeline_mode<synchronous>, transform_indices = @transform_2, window_bounds = array<i64: 128, 128>}, {pipeline_mode = #tpu.pipeline_mode<synchronous>, transform_indices = @transform_3, window_bounds = array<i64: 1, 256>}, {transform_indices = @transform_4, window_bounds = array<i64: 2, 256>}]} {
    %c0 = arith.constant 0 : index
    %c0_0 = arith.constant 0 : index
    %0 = vector.load %arg1[%c0, %c0_0] : memref<40x64xbf16, #tpu.memory_space<vmem>>, vector<40x64xbf16>
    %c0_1 = arith.constant 0 : index
    %c0_2 = arith.constant 0 : index
    %1 = vector.load %arg2[%c0_1, %c0_2] : memref<64x128xbf16, #tpu.memory_space<vmem>>, vector<64x128xbf16>
    %cst = arith.constant dense<0.000000e+00> : vector<40x128xf32>
    %2 = tpu.matmul %0, %1, %cst {dimension_numbers = #tpu.dot_dimension_numbers<[1], [0], [0], [1], [0, 0, 1, 1], [], []>} : vector<40x64xbf16>, vector<64x128xbf16>, vector<40x128xf32> -> vector<40x128xf32>
    %3 = arith.truncf %2 : vector<40x128xf32> to vector<40x128xbf16>
    %c0_3 = arith.constant 0 : index
    %c0_4 = arith.constant 0 : index
    %4 = vector.load %arg3[%c0_3, %c0_4] : memref<128x128xbf16, #tpu.memory_space<vmem>>, vector<128x128xbf16>
    %cst_5 = arith.constant dense<0.000000e+00> : vector<40x128xf32>
    %5 = tpu.matmul %3, %4, %cst_5 {dimension_numbers = #tpu.dot_dimension_numbers<[1], [0], [0], [1], [0, 0, 1, 1], [], []>} : vector<40x128xbf16>, vector<128x128xbf16>, vector<40x128xf32> -> vector<40x128xf32>
    %cst_6 = arith.constant 0.000000e+00 : f32
    %6 = vector.broadcast %cst_6 : f32 to vector<2x128xf32>
    %cst_7 = arith.constant 0.000000e+00 : f32
    %7 = vector.broadcast %cst_7 : f32 to vector<2x256xf32>
    %8 = vector.extract_strided_slice %5 {offsets = [0, 0], sizes = [2, 128], strides = [1, 1]} : vector<40x128xf32> to vector<2x128xf32>
    %9 = vector.extract_strided_slice %5 {offsets = [16, 0], sizes = [2, 128], strides = [1, 1]} : vector<40x128xf32> to vector<2x128xf32>
    %10 = vector.extract_strided_slice %5 {offsets = [32, 0], sizes = [2, 128], strides = [1, 1]} : vector<40x128xf32> to vector<2x128xf32>
    %11 = tpu.concatenate %6, %8, %9, %10 in 1 : vector<2x128xf32>, vector<2x128xf32>, vector<2x128xf32>, vector<2x128xf32> -> vector<2x512xf32>
    %12 = vector.extract_strided_slice %11 {offsets = [0, 160], sizes = [2, 256], strides = [1, 1]} : vector<2x512xf32> to vector<2x256xf32>
    %13 = arith.addf %7, %12 : vector<2x256xf32>
    %14 = vector.extract_strided_slice %5 {offsets = [2, 0], sizes = [2, 128], strides = [1, 1]} : vector<40x128xf32> to vector<2x128xf32>
    %15 = vector.extract_strided_slice %5 {offsets = [18, 0], sizes = [2, 128], strides = [1, 1]} : vector<40x128xf32> to vector<2x128xf32>
    %16 = tpu.concatenate %6, %14, %15, %6 in 1 : vector<2x128xf32>, vector<2x128xf32>, vector<2x128xf32>, vector<2x128xf32> -> vector<2x512xf32>
    %17 = vector.extract_strided_slice %16 {offsets = [0, 144], sizes = [2, 256], strides = [1, 1]} : vector<2x512xf32> to vector<2x256xf32>
    %18 = arith.addf %13, %17 : vector<2x256xf32>
    %19 = vector.extract_strided_slice %5 {offsets = [4, 0], sizes = [2, 128], strides = [1, 1]} : vector<40x128xf32> to vector<2x128xf32>
    %20 = vector.extract_strided_slice %5 {offsets = [20, 0], sizes = [2, 128], strides = [1, 1]} : vector<40x128xf32> to vector<2x128xf32>
    %21 = tpu.concatenate %6, %19, %20, %6 in 1 : vector<2x128xf32>, vector<2x128xf32>, vector<2x128xf32>, vector<2x128xf32> -> vector<2x512xf32>
    %22 = vector.extract_strided_slice %21 {offsets = [0, 128], sizes = [2, 256], strides = [1, 1]} : vector<2x512xf32> to vector<2x256xf32>
    %23 = arith.addf %18, %22 : vector<2x256xf32>
    %24 = vector.extract_strided_slice %5 {offsets = [6, 0], sizes = [2, 128], strides = [1, 1]} : vector<40x128xf32> to vector<2x128xf32>
    %25 = vector.extract_strided_slice %5 {offsets = [22, 0], sizes = [2, 128], strides = [1, 1]} : vector<40x128xf32> to vector<2x128xf32>
    %26 = tpu.concatenate %6, %24, %25, %6 in 1 : vector<2x128xf32>, vector<2x128xf32>, vector<2x128xf32>, vector<2x128xf32> -> vector<2x512xf32>
    %27 = vector.extract_strided_slice %26 {offsets = [0, 112], sizes = [2, 256], strides = [1, 1]} : vector<2x512xf32> to vector<2x256xf32>
    %28 = arith.addf %23, %27 : vector<2x256xf32>
    %29 = vector.extract_strided_slice %5 {offsets = [8, 0], sizes = [2, 128], strides = [1, 1]} : vector<40x128xf32> to vector<2x128xf32>
    %30 = vector.extract_strided_slice %5 {offsets = [24, 0], sizes = [2, 128], strides = [1, 1]} : vector<40x128xf32> to vector<2x128xf32>
    %31 = tpu.concatenate %6, %29, %30, %6 in 1 : vector<2x128xf32>, vector<2x128xf32>, vector<2x128xf32>, vector<2x128xf32> -> vector<2x512xf32>
    %32 = vector.extract_strided_slice %31 {offsets = [0, 96], sizes = [2, 256], strides = [1, 1]} : vector<2x512xf32> to vector<2x256xf32>
    %33 = arith.addf %28, %32 : vector<2x256xf32>
    %34 = vector.extract_strided_slice %5 {offsets = [10, 0], sizes = [2, 128], strides = [1, 1]} : vector<40x128xf32> to vector<2x128xf32>
    %35 = vector.extract_strided_slice %5 {offsets = [26, 0], sizes = [2, 128], strides = [1, 1]} : vector<40x128xf32> to vector<2x128xf32>
    %36 = tpu.concatenate %6, %34, %35, %6 in 1 : vector<2x128xf32>, vector<2x128xf32>, vector<2x128xf32>, vector<2x128xf32> -> vector<2x512xf32>
    %37 = vector.extract_strided_slice %36 {offsets = [0, 80], sizes = [2, 256], strides = [1, 1]} : vector<2x512xf32> to vector<2x256xf32>
    %38 = arith.addf %33, %37 : vector<2x256xf32>
    %39 = vector.extract_strided_slice %5 {offsets = [12, 0], sizes = [2, 128], strides = [1, 1]} : vector<40x128xf32> to vector<2x128xf32>
    %40 = vector.extract_strided_slice %5 {offsets = [28, 0], sizes = [2, 128], strides = [1, 1]} : vector<40x128xf32> to vector<2x128xf32>
    %41 = tpu.concatenate %6, %39, %40, %6 in 1 : vector<2x128xf32>, vector<2x128xf32>, vector<2x128xf32>, vector<2x128xf32> -> vector<2x512xf32>
    %42 = vector.extract_strided_slice %41 {offsets = [0, 64], sizes = [2, 256], strides = [1, 1]} : vector<2x512xf32> to vector<2x256xf32>
    %43 = arith.addf %38, %42 : vector<2x256xf32>
    %44 = vector.extract_strided_slice %5 {offsets = [14, 0], sizes = [2, 128], strides = [1, 1]} : vector<40x128xf32> to vector<2x128xf32>
    %45 = vector.extract_strided_slice %5 {offsets = [30, 0], sizes = [2, 128], strides = [1, 1]} : vector<40x128xf32> to vector<2x128xf32>
    %46 = tpu.concatenate %6, %44, %45, %6 in 1 : vector<2x128xf32>, vector<2x128xf32>, vector<2x128xf32>, vector<2x128xf32> -> vector<2x512xf32>
    %47 = vector.extract_strided_slice %46 {offsets = [0, 48], sizes = [2, 256], strides = [1, 1]} : vector<2x512xf32> to vector<2x256xf32>
    %48 = arith.addf %43, %47 : vector<2x256xf32>
    %c0_8 = arith.constant 0 : index
    %c0_9 = arith.constant 0 : index
    %49 = vector.load %arg4[%c0_8, %c0_9] : memref<1x256xf32, #tpu.memory_space<vmem>>, vector<1x256xf32>
    %50 = vector.broadcast %49 : vector<1x256xf32> to vector<2x256xf32>
    %51 = arith.mulf %48, %50 : vector<2x256xf32>
    %c0_10 = arith.constant 0 : index
    %c0_11 = arith.constant 0 : index
    %52 = vector.load %arg5[%c0_10, %c0_11] : memref<2x256xf32, #tpu.memory_space<vmem>>, vector<2x256xf32>
    tpu.vector_store %arg5[%c0_10, %c0_11], %51 {strides = array<i32>} : memref<2x256xf32, #tpu.memory_space<vmem>>, vector<2x256xf32>,
    return
  }
  func.func @transform_0(%arg0: i32) -> (i32, i32) {
    %c0_i32 = arith.constant 0 : i32
    %c0_i32_0 = arith.constant 0 : i32
    return %arg0, %c0_i32 : i32, i32
  }
  func.func @transform_1(%arg0: i32) -> (i32, i32) {
    %c0_i32 = arith.constant 0 : i32
    %c0_i32_0 = arith.constant 0 : i32
    %c0_i32_1 = arith.constant 0 : i32
    return %c0_i32, %c0_i32_0 : i32, i32
  }
  func.func @transform_2(%arg0: i32) -> (i32, i32) {
    %c0_i32 = arith.constant 0 : i32
    %c0_i32_0 = arith.constant 0 : i32
    %c0_i32_1 = arith.constant 0 : i32
    return %c0_i32, %c0_i32_0 : i32, i32
  }
  func.func @transform_3(%arg0: i32) -> (i32, i32) {
    %c0_i32 = arith.constant 0 : i32
    %c0_i32_0 = arith.constant 0 : i32
    %c0_i32_1 = arith.constant 0 : i32
    return %c0_i32, %c0_i32_0 : i32, i32
  }
  func.func @transform_4(%arg0: i32) -> (i32, i32) {
    %c0_i32 = arith.constant 0 : i32
    %c0_i32_0 = arith.constant 0 : i32
    return %arg0, %c0_i32 : i32, i32
  }
}

</mosaic_0001>

<llo_original>
// kernel: tpu_custom_call.1
$region0: #{tpu_custom_call.1}
  #allocation0 [shape = 'u32[]', space=smem, size = 0x4, offset = 0x4, fixed_abs, tag = 'smem constant byte address 0x4 - core index']
  #allocation1 [shape = 'u32[144,128]{1,0:T(1,128)}', space=vmem, size = 0x12000, scoped, tag = 'internal scratch']
  %s0 = inlined_call_operand.hbm [shape: bf16[40,64], index: 0, kind: input, shape index: {}]
  %s1 = inlined_call_operand.hbm [shape: bf16[64,128], index: 1, kind: input, shape index: {}]
  %s2 = inlined_call_operand.hbm [shape: bf16[128,128], index: 2, kind: input, shape index: {}]
  %s3 = inlined_call_operand.vmem [shape: f32[1,256], index: 3, kind: input, shape index: {}]
  %s4 = inlined_call_operand.hbm [shape: f32[2,256], index: 4, kind: output, shape index: {}]
  %s5 = sld [smem:[#allocation0]]
  $region38: #{tpu_custom_call.1} parent=0
    _
  %s7 = ssub.s32 1, %s5
  %s8 = scalar_select 0, %s7, %s5
  $region1: #{tpu_custom_call.1} parent=0
    #allocation2 [shape = 'u8[10240]{0}', space=vmem, size = 0x2800, scoped, tag = 'input window, operand 0, single buffered']
    #allocation3 [shape = 's32[1]{0}', space=sflag, size = 0x4, scoped, tag = 'scoped memory for tpu_custom_call.1']
    #allocation4 [shape = 's32[1]{0}', space=sflag, size = 0x4, scoped, tag = 'scoped memory for tpu_custom_call.1']
    #allocation5 [shape = 'u8[16384]{0}', space=vmem, size = 0x4000, scoped, tag = 'input window, operand 1, single buffered']
    #allocation6 [shape = 's32[1]{0}', space=sflag, size = 0x4, scoped, tag = 'scoped memory for tpu_custom_call.1']
    #allocation7 [shape = 'u8[32768]{0}', space=vmem, size = 0x8000, scoped, tag = 'input window, operand 2, single buffered']
    #allocation8 [shape = 'u8[2048]{0}', space=vmem, size = 0x800, scoped, tag = 'output window, operand 0, single buffered']
    %9 = vsyncpa [#allocation3], 0
    %10 = vsyncpa [#allocation6], 0
    %11 = vsyncpa [#allocation4], 0
    // Predicated region
    $region2: #{tpu_custom_call.1} parent=1 // pred_check
      _
    $region3: #{tpu_custom_call.1} parent=1 // pred_check_branch
      %13 = sbr.rel (0) target = $region5
    $region4: #{tpu_custom_call.1} parent=1 // pred_region
      %s15 = ssub.s32 320, 320
      %16 = vsyncadd [#allocation3], %s15
      %s17 = sshll.u32 [#allocation2], 4
      %s18 = int_to_ptr.vmem [resolvable:$true] %s17
      %23 = dma.hbm_to_vmem [thread:$0]  %s0, 320, %s18, [#allocation3], 64, 64, 4
    $region5: #{tpu_custom_call.1} parent=1 // pred_fallthru
      _
    // Predicated region
    $region6: #{tpu_custom_call.1} parent=1 // pred_check
      _
    $region7: #{tpu_custom_call.1} parent=1 // pred_check_branch
      %25 = sbr.rel (0) target = $region9
    $region8: #{tpu_custom_call.1} parent=1 // pred_region
      %s27 = ssub.s32 512, 512
      %28 = vsyncadd [#allocation6], %s27
      %s29 = sshll.u32 [#allocation5], 4
      %s30 = int_to_ptr.vmem [resolvable:$true] %s29
      %35 = dma.hbm_to_vmem [thread:$0]  %s1, 512, %s30, [#allocation6], 64, 64, 4
    $region9: #{tpu_custom_call.1} parent=1 // pred_fallthru
      _
    // Predicated region
    $region10: #{tpu_custom_call.1} parent=1 // pred_check
      _
    $region11: #{tpu_custom_call.1} parent=1 // pred_check_branch
      %37 = sbr.rel (0) target = $region13
    $region12: #{tpu_custom_call.1} parent=1 // pred_region
      %s39 = ssub.s32 1024, 1024
      %40 = vsyncadd [#allocation6], %s39
      %s41 = sshll.u32 [#allocation7], 4
      %s42 = int_to_ptr.vmem [resolvable:$true] %s41
      %47 = dma.hbm_to_vmem [thread:$0]  %s2, 1024, %s42, [#allocation6], 64, 64, 4
    $region13: #{tpu_custom_call.1} parent=1 // pred_fallthru
      _
    // Predicated region
    $region14: #{tpu_custom_call.1} parent=1 // pred_check
      _
    $region15: #{tpu_custom_call.1} parent=1 // pred_check_branch
      %49 = sbr.rel (0) target = $region17
    $region16: #{tpu_custom_call.1} parent=1 // pred_region
      _
    $region17: #{tpu_custom_call.1} parent=1 // pred_fallthru
      _
    // Predicated region
    $region18: #{tpu_custom_call.1} parent=1 // pred_check
      _
    $region19: #{tpu_custom_call.1} parent=1 // pred_check_branch
      %51 = sbr.rel (0) target = $region21
    $region20: #{tpu_custom_call.1} parent=1 // pred_region
      %52 = dma.done [#allocation3], 320
    $region21: #{tpu_custom_call.1} parent=1 // pred_fallthru
      _
    // Predicated region
    $region22: #{tpu_custom_call.1} parent=1 // pred_check
      _
    $region23: #{tpu_custom_call.1} parent=1 // pred_check_branch
      %54 = sbr.rel (0) target = $region25
    $region24: #{tpu_custom_call.1} parent=1 // pred_region
      %55 = dma.done [#allocation6], 512
    $region25: #{tpu_custom_call.1} parent=1 // pred_fallthru
      _
    // Predicated region
    $region26: #{tpu_custom_call.1} parent=1 // pred_check
      _
    $region27: #{tpu_custom_call.1} parent=1 // pred_check_branch
      %57 = sbr.rel (0) target = $region29
    $region28: #{tpu_custom_call.1} parent=1 // pred_region
      %58 = dma.done [#allocation6], 1024
    $region29: #{tpu_custom_call.1} parent=1 // pred_fallthru
      _
    %v60 = vld [vmem:[#allocation2] sm:$0xf]
    %v61 = vld [vmem:[#allocation2 + $0x4] sm:$0xf]
    %v62 = vld [vmem:[#allocation2 + $0x8] sm:$0xf]
    %v63 = vld [vmem:[#allocation2 + $0xc] sm:$0xf]
    %v64 = vld [vmem:[#allocation2 + $0x10] sm:$0xf]
    %v65 = vld [vmem:[#allocation5] sm:$0xf]
    %v66 = vld [vmem:[#allocation5 + $0x4] sm:$0xf]
    %v67 = vld [vmem:[#allocation5 + $0x8] sm:$0xf]
    %v68 = vld [vmem:[#allocation5 + $0xc] sm:$0xf]
    %v69 = vld [vmem:[#allocation5 + $0x10] sm:$0xf]
    %v70 = vld [vmem:[#allocation5 + $0x14] sm:$0xf]
    %v71 = vld [vmem:[#allocation5 + $0x18] sm:$0xf]
    %v72 = vld [vmem:[#allocation5 + $0x1c] sm:$0xf]
    %v78 = vunpack.c.l.b16 %v60
    %v79 = vunpack.c.l.b16 %v61
    %v80 = vunpack.c.l.b16 %v62
    %v81 = vunpack.c.l.b16 %v63
    %v82 = vunpack.c.l.b16 %v64
    %v83 = vpack.c.b16 %v79, %v78
    %v84 = vpack.c.b16 %v81, %v80
    %v85 = vpack.c.b16 %v82, %v82
    %v94 = vunpack.c.l.b16 %v65
    %v95 = vunpack.c.l.b16 %v66
    %v96 = vunpack.c.l.b16 %v67
    %v97 = vunpack.c.l.b16 %v68
    %v98 = vunpack.c.l.b16 %v69
    %v99 = vunpack.c.l.b16 %v70
    %v100 = vunpack.c.l.b16 %v71
    %v101 = vunpack.c.l.b16 %v72
    %v102 = vpack.c.b16 %v95, %v94
    %v103 = vpack.c.b16 %v97, %v96
    %v104 = vpack.c.b16 %v99, %v98
    %v105 = vpack.c.b16 %v101, %v100
    %vm110 = vcmask 523264
    %v112 = vsel %vm110, %v83, 0
    %v115 = vsel %vm110, %v84, 0
    %v118 = vsel %vm110, %v85, 0
    %120 = vmatprep.subr.bf16.mxu0 0
    %121 = vmatpush1.bf16.msra.mxu0 %v102
    %122 = vmatprep.subr.bf16.mxu0 0
    %123 = vmatpush1.bf16.msra.mxu0 %v103
    %124 = vmatprep.subr.bf16.mxu0 0
    %125 = vmatpush1.bf16.msra.mxu0 %v104
    %126 = vmatprep.subr.bf16.mxu0 0
    %127 = vmatpush1.bf16.msra.mxu0 %v105
    %128 = vmatprep.subr.bf16.mxu0 0
    %129 = vmatpush1.bf16.msra.mxu0 0
    %130 = vmatprep.subr.bf16.mxu0 0
    %131 = vmatpush1.bf16.msra.mxu0 0
    %132 = vmatprep.subr.bf16.mxu0 0
    %133 = vmatpush1.bf16.msra.mxu0 0
    %134 = vmatprep.subr.bf16.mxu0 0
    %135 = vmatpush1.bf16.msra.mxu0 0
    %136 = vmatprep.subr.bf16.mxu0 0
    %137 = vmatpush1.bf16.msra.mxu0 0
    %138 = vmatprep.subr.bf16.mxu0 0
    %139 = vmatpush1.bf16.msra.mxu0 0
    %140 = vmatprep.subr.bf16.mxu0 0
    %141 = vmatpush1.bf16.msra.mxu0 0
    %142 = vmatprep.subr.bf16.mxu0 0
    %143 = vmatpush1.bf16.msra.mxu0 0
    %144 = vmatprep.subr.bf16.mxu0 0
    %145 = vmatpush1.bf16.msra.mxu0 0
    %146 = vmatprep.subr.bf16.mxu0 0
    %147 = vmatpush1.bf16.msra.mxu0 0
    %148 = vmatprep.subr.bf16.mxu0 0
    %149 = vmatpush1.bf16.msra.mxu0 0
    %150 = vmatprep.subr.bf16.mxu0 0
    %151 = vmatpush1.bf16.msra.mxu0 0
    %152 = vmatprep.mubr.bf16.mxu0 0
    %153 = vmatmul.mubr.bf16.gmra.mrb[0].mxu0 %v112
    %v154 = vpop.f32.mrb[0].mxu0
    %v155 = vadd.f32 0.0, %v154
    %v156 = vpop.f32.mrb[0].mxu0
    %v157 = vpop.f32.mrb[0].mxu0
    %v158 = vadd.f32 0.0, %v157
    %v159 = vpop.f32.mrb[0].mxu0
    %160 = vmatprep.mubr.bf16.mxu0 0
    %161 = vmatmul.mubr.bf16.gmra.mrb[0].mxu0 %v115
    %v162 = vpop.f32.mrb[0].mxu0
    %v163 = vadd.f32 0.0, %v162
    %v164 = vpop.f32.mrb[0].mxu0
    %v165 = vpop.f32.mrb[0].mxu0
    %v166 = vadd.f32 0.0, %v165
    %v167 = vpop.f32.mrb[0].mxu0
    %168 = vmatprep.mubr.bf16.mxu0 0
    %169 = vmatmul.mubr.bf16.gmra.mrb[0].mxu0 %v118
    %v170 = vpop.f32.mrb[0].mxu0
    %v171 = vadd.f32 0.0, %v170
    %v172 = vpop.f32.mrb[0].mxu0
    %v173 = vpop.f32.mrb[0].mxu0
    %v174 = vpop.f32.mrb[0].mxu0
    %175 = vdwg.mxu0
    %v176 = vpack.c.bf16 %v158, %v155
    %v177 = vpack.c.bf16 %v166, %v163
    %v178 = vpack.c.bf16 %v171, %v171
    %v179 = vld [vmem:[#allocation7] sm:$0xf]
    %v180 = vld [vmem:[#allocation7 + $0x4] sm:$0xf]
    %v181 = vld [vmem:[#allocation7 + $0x8] sm:$0xf]
    %v182 = vld [vmem:[#allocation7 + $0xc] sm:$0xf]
    %v183 = vld [vmem:[#allocation7 + $0x10] sm:$0xf]
    %v184 = vld [vmem:[#allocation7 + $0x14] sm:$0xf]
    %v185 = vld [vmem:[#allocation7 + $0x18] sm:$0xf]
    %v186 = vld [vmem:[#allocation7 + $0x1c] sm:$0xf]
    %v187 = vld [vmem:[#allocation7 + $0x20] sm:$0xf]
    %v188 = vld [vmem:[#allocation7 + $0x24] sm:$0xf]
    %v189 = vld [vmem:[#allocation7 + $0x28] sm:$0xf]
    %v190 = vld [vmem:[#allocation7 + $0x2c] sm:$0xf]
    %v191 = vld [vmem:[#allocation7 + $0x30] sm:$0xf]
    %v192 = vld [vmem:[#allocation7 + $0x34] sm:$0xf]
    %v193 = vld [vmem:[#allocation7 + $0x38] sm:$0xf]
    %v194 = vld [vmem:[#allocation7 + $0x3c] sm:$0xf]
    %v211 = vunpack.c.l.b16 %v179
    %v212 = vunpack.c.l.b16 %v180
    %v213 = vunpack.c.l.b16 %v181
    %v214 = vunpack.c.l.b16 %v182
    %v215 = vunpack.c.l.b16 %v183
    %v216 = vunpack.c.l.b16 %v184
    %v217 = vunpack.c.l.b16 %v185
    %v218 = vunpack.c.l.b16 %v186
    %v219 = vunpack.c.l.b16 %v187
    %v220 = vunpack.c.l.b16 %v188
    %v221 = vunpack.c.l.b16 %v189
    %v222 = vunpack.c.l.b16 %v190
    %v223 = vunpack.c.l.b16 %v191
    %v224 = vunpack.c.l.b16 %v192
    %v225 = vunpack.c.l.b16 %v193
    %v226 = vunpack.c.l.b16 %v194
    %v227 = vpack.c.b16 %v212, %v211
    %v228 = vpack.c.b16 %v214, %v213
    %v229 = vpack.c.b16 %v216, %v215
    %v230 = vpack.c.b16 %v218, %v217
    %v231 = vpack.c.b16 %v220, %v219
    %v232 = vpack.c.b16 %v222, %v221
    %v233 = vpack.c.b16 %v224, %v223
    %v234 = vpack.c.b16 %v226, %v225
    %243 = vmatprep.subr.bf16.mxu0 0
    %244 = vmatpush1.bf16.msra.mxu0 %v227
    %245 = vmatprep.subr.bf16.mxu0 0
    %246 = vmatpush1.bf16.msra.mxu0 %v228
    %247 = vmatprep.subr.bf16.mxu0 0
    %248 = vmatpush1.bf16.msra.mxu0 %v229
    %249 = vmatprep.subr.bf16.mxu0 0
    %250 = vmatpush1.bf16.msra.mxu0 %v230
    %251 = vmatprep.subr.bf16.mxu0 0
    %252 = vmatpush1.bf16.msra.mxu0 %v231
    %253 = vmatprep.subr.bf16.mxu0 0
    %254 = vmatpush1.bf16.msra.mxu0 %v232
    %255 = vmatprep.subr.bf16.mxu0 0
    %256 = vmatpush1.bf16.msra.mxu0 %v233
    %257 = vmatprep.subr.bf16.mxu0 0
    %258 = vmatpush1.bf16.msra.mxu0 %v234
    %259 = vmatprep.subr.bf16.mxu0 0
    %260 = vmatpush1.bf16.msra.mxu0 0
    %261 = vmatprep.subr.bf16.mxu0 0
    %262 = vmatpush1.bf16.msra.mxu0 0
    %263 = vmatprep.subr.bf16.mxu0 0
    %264 = vmatpush1.bf16.msra.mxu0 0
    %265 = vmatprep.subr.bf16.mxu0 0
    %266 = vmatpush1.bf16.msra.mxu0 0
    %267 = vmatprep.subr.bf16.mxu0 0
    %268 = vmatpush1.bf16.msra.mxu0 0
    %269 = vmatprep.subr.bf16.mxu0 0
    %270 = vmatpush1.bf16.msra.mxu0 0
    %271 = vmatprep.subr.bf16.mxu0 0
    %272 = vmatpush1.bf16.msra.mxu0 0
    %273 = vmatprep.subr.bf16.mxu0 0
    %274 = vmatpush1.bf16.msra.mxu0 0
    %275 = vmatprep.mubr.bf16.mxu0 0
    %276 = vmatmul.mubr.bf16.gmra.mrb[0].mxu0 %v176
    %v277 = vpop.f32.mrb[0].mxu0
    %v278 = vadd.f32 0.0, %v277
    %v279 = vpop.f32.mrb[0].mxu0
    %v280 = vpop.f32.mrb[0].mxu0
    %v281 = vadd.f32 0.0, %v280
    %v282 = vpop.f32.mrb[0].mxu0
    %283 = vmatprep.mubr.bf16.mxu0 0
    %284 = vmatmul.mubr.bf16.gmra.mrb[0].mxu0 %v177
    %v285 = vpop.f32.mrb[0].mxu0
    %v286 = vadd.f32 0.0, %v285
    %v287 = vpop.f32.mrb[0].mxu0
    %v288 = vpop.f32.mrb[0].mxu0
    %v289 = vadd.f32 0.0, %v288
    %v290 = vpop.f32.mrb[0].mxu0
    %291 = vmatprep.mubr.bf16.mxu0 0
    %292 = vmatmul.mubr.bf16.gmra.mrb[0].mxu0 %v178
    %v293 = vpop.f32.mrb[0].mxu0
    %v294 = vadd.f32 0.0, %v293
    %v295 = vpop.f32.mrb[0].mxu0
    %v296 = vpop.f32.mrb[0].mxu0
    %v297 = vpop.f32.mrb[0].mxu0
    %298 = vdwg.mxu0
    %v299 = vadd.f32 %v278, 0.0
    %v300 = vadd.f32 %v286, 0.0
    %v301 = vadd.f32 %v294, 0.0
    %v303 = vrot.slane %v278, 2
    %v305 = vrot.slane %v286, 2
    %307 = vrot.lane.b32.xlu0 %v303, 16
    %v308 = vpop.permute.xlu0 %307
    %309 = vrot.lane.b32.xlu0 %v305, 16
    %v310 = vpop.permute.xlu0 %309
    %311 = vrot.lane.b32.xlu0 0.0, 16
    %v312 = vpop.permute.xlu0 %311
    %vm313 = vcmask 130048
    %v314 = vsel %vm313, %v308, %v310
    %v315 = vsel %vm313, %v310, %v312
    %v319 = vadd.f32 %v299, %v308
    %v320 = vadd.f32 %v300, %v314
    %v321 = vadd.f32 %v301, %v315
    %v322 = vrot.slane %v278, 4
    %v323 = vrot.slane %v286, 4
    %324 = vrot.lane.b32.xlu0 %v322, 32
    %v325 = vpop.permute.xlu0 %324
    %326 = vrot.lane.b32.xlu0 %v323, 32
    %v327 = vpop.permute.xlu0 %326
    %vm328 = vcmask 261120
    %v329 = vsel %vm328, %v325, %v327
    %v333 = vadd.f32 %v319, %v325
    %v334 = vadd.f32 %v320, %v329
    %v335 = vadd.f32 %v321, %v327
    %v336 = vrot.slane %v278, 6
    %v337 = vrot.slane %v286, 6
    %338 = vrot.lane.b32.xlu0 0.0, 48
    %v339 = vpop.permute.xlu0 %338
    %340 = vrot.lane.b32.xlu0 %v336, 48
    %v341 = vpop.permute.xlu0 %340
    %342 = vrot.lane.b32.xlu0 %v337, 48
    %v343 = vpop.permute.xlu0 %342
    %vm344 = vcmask 392192
    %v345 = vsel %vm344, %v339, %v341
    %v346 = vsel %vm344, %v341, %v343
    %v350 = vadd.f32 %v333, %v345
    %v351 = vadd.f32 %v334, %v346
    %v352 = vadd.f32 %v335, %v343
    %355 = vrot.lane.b32.xlu0 0.0, 64
    %v356 = vpop.permute.xlu0 %355
    %357 = vrot.lane.b32.xlu0 %v281, 64
    %v358 = vpop.permute.xlu0 %357
    %359 = vrot.lane.b32.xlu0 %v289, 64
    %v360 = vpop.permute.xlu0 %359
    %v361 = vsel %vm110, %v356, %v358
    %v362 = vsel %vm110, %v358, %v360
    %v366 = vadd.f32 %v350, %v361
    %v367 = vadd.f32 %v351, %v362
    %v368 = vadd.f32 %v352, %v360
    %v369 = vrot.slane %v281, 2
    %v370 = vrot.slane %v289, 2
    %371 = vrot.lane.b32.xlu0 0.0, 80
    %v372 = vpop.permute.xlu0 %371
    %373 = vrot.lane.b32.xlu0 %v369, 80
    %v374 = vpop.permute.xlu0 %373
    %375 = vrot.lane.b32.xlu0 %v370, 80
    %v376 = vpop.permute.xlu0 %375
    %vm377 = vcmask 654336
    %v378 = vsel %vm377, %v372, %v374
    %v379 = vsel %vm377, %v374, %v376
    %v383 = vadd.f32 %v366, %v378
    %v384 = vadd.f32 %v367, %v379
    %v385 = vadd.f32 %v368, %v376
    %v386 = vrot.slane %v281, 4
    %v387 = vrot.slane %v289, 4
    %388 = vrot.lane.b32.xlu0 0.0, 96
    %v389 = vpop.permute.xlu0 %388
    %390 = vrot.lane.b32.xlu0 %v386, 96
    %v391 = vpop.permute.xlu0 %390
    %392 = vrot.lane.b32.xlu0 %v387, 96
    %v393 = vpop.permute.xlu0 %392
    %vm394 = vcmask 785408
    %v395 = vsel %vm394, %v389, %v391
    %v396 = vsel %vm394, %v391, %v393
    %v400 = vadd.f32 %v383, %v395
    %v401 = vadd.f32 %v384, %v396
    %v402 = vadd.f32 %v385, %v393
    %v403 = vrot.slane %v281, 6
    %v404 = vrot.slane %v289, 6
    %405 = vrot.lane.b32.xlu0 0.0, 112
    %v406 = vpop.permute.xlu0 %405
    %407 = vrot.lane.b32.xlu0 %v403, 112
    %v408 = vpop.permute.xlu0 %407
    %409 = vrot.lane.b32.xlu0 %v404, 112
    %v410 = vpop.permute.xlu0 %409
    %vm411 = vcmask 916480
    %v412 = vsel %vm411, %v406, %v408
    %v413 = vsel %vm411, %v408, %v410
    %v417 = vadd.f32 %v400, %v412
    %v418 = vadd.f32 %v401, %v413
    %v419 = vadd.f32 %v402, %v410
    %v420 = vld [vmem:[%s3] sm:$0x3]
    %v422 = vlaneseq
    %v423 = vshrl.u32 %v422, 7
    %v424 = vsub.s32 0, %v423
    %v425 = vrot.slane %v420, %v424
    %v426 = vlaneseq
    %v427 = vshrl.u32 %v426, 7
    %v428 = vsub.s32 1, %v427
    %v429 = vrot.slane %v420, %v428
    %430 = vrot.lane.b32.xlu0 %v425, 32
    %v431 = vpop.permute.xlu0 %430
    %432 = vrot.lane.b32.xlu0 %v429, 32
    %v433 = vpop.permute.xlu0 %432
    %v434 = vsel %vm328, %v431, %v433
    %v438 = vmul.f32 %v417, %v431
    %v439 = vmul.f32 %v418, %v434
    %v440 = vmul.f32 %v419, %v433
    %v444 = vcombine.low %v438, %v439
    %v446 = vunpack.c.l.s4 1983009808
    %v447 = vunpack.c.0.s8 %v446
    %v448 = vlaneseq
    %v449 = vshrl.u32 %v448, 7
    %v450 = vsub.s32 %v447, %v449
    %v451 = vrot.slane %v444, %v450
    %v453 = vunpack.c.l.s4 1983009808
    %v454 = vunpack.c.0.s8 %v453
    %v455 = vlaneseq
    %v456 = vshrl.u32 %v455, 7
    %v457 = vsub.s32 %v454, %v456
    %v458 = vrot.slane %v440, %v457
    %v459 = vcombine.low %v451, %v458
    %460 = vrot.lane.b32.xlu0 %v459, 96
    %v461 = vpop.permute.xlu0 %460
    %v462 = vrot.slane %v461, 2
    %v463 = vsel %vm394, %v461, %v462
    %465 = vst [vmem:[#allocation8] sm:$0xf] %v463
    // Predicated region
    $region30: #{tpu_custom_call.1} parent=1 // pred_check
      _
    $region31: #{tpu_custom_call.1} parent=1 // pred_check_branch
      %467 = sbr.rel (0) target = $region33
    $region32: #{tpu_custom_call.1} parent=1 // pred_region
      %s469 = ssub.s32 64, 64
      %470 = vsyncadd [#allocation4], %s469
      %s472 = sshll.u32 [#allocation8], 4
      %s473 = int_to_ptr.vmem [resolvable:$true] %s472
      %475 = dma.vmem_to_hbm [thread:$0]  %s473, 64, %s4, [#allocation4]
    $region33: #{tpu_custom_call.1} parent=1 // pred_fallthru
      _
    // Predicated region
    $region34: #{tpu_custom_call.1} parent=1 // pred_check
      _
    $region35: #{tpu_custom_call.1} parent=1 // pred_check_branch
      %477 = sbr.rel (0) target = $region37
    $region36: #{tpu_custom_call.1} parent=1 // pred_region
      %478 = dma.done [#allocation4], 64
    $region37: #{tpu_custom_call.1} parent=1 // pred_fallthru
      _
    %479 = vsyncpa [#allocation3], 1
    %480 = vsyncpa [#allocation6], 1
    %481 = vsyncpa [#allocation4], 1

</llo_original>
